<compile_context>
chip_gen: v7x
topology: tpu7x:2x2x1
jax: 0.10.0
libtpu: 0.0.40
codegen_flags: <defaults>
</compile_context>

<pallas_src>
import jax
import jax.numpy as jnp
from jax.experimental import pallas as pl
from jax.experimental.pallas import tpu as pltpu

LANE = 128


def _round_up(n: int, m: int) -> int:
    return (n + m - 1) // m * m


def actor_ppo_kernel(x_ref, w1_ref, w23_ref, b_ref, o_ref):
    """Fused MLP forward for one batch tile: (Linear+ReLU) x2 -> Linear -> tanh."""
    cdt = w1_ref.dtype              # matmul operand dtype (bf16 or f32)
    fpad = w1_ref.shape[1]          # lane-padded feature width (multiple of 128)

    # In-kernel cast: VPU filler hidden under the matmuls (no wrapper HBM pass).
    x = x_ref[...].astype(cdt)

    # Accumulate in f32; bias adds / ReLU / tanh stay f32.
    h1 = jnp.dot(x, w1_ref[...], preferred_element_type=jnp.float32) + b_ref[0:1, :]
    h1 = jnp.maximum(h1, 0.0)

    # Static slices of the packed W2|W3 slab are zero-cost ref views.
    h2 = jnp.dot(h1.astype(cdt), w23_ref[:, :fpad],
                 preferred_element_type=jnp.float32) + b_ref[1:2, :]
    h2 = jnp.maximum(h2, 0.0)

    a = jnp.dot(h2.astype(cdt), w23_ref[:, fpad:],
                preferred_element_type=jnp.float32) + b_ref[2:3, :]
    o_ref[...] = jnp.tanh(a).astype(o_ref.dtype)


def prepare_params(params, compute_dtype=jnp.bfloat16):
    """Pad feature dims to 128 lanes, pack W2|W3 and the biases (done ONCE)."""
    (w1, b1), (w2, b2), (w3, b3) = params
    state_dim = w1.shape[0]
    fpad = max(_round_up(d, LANE) for d in (w1.shape[1], w2.shape[1], w3.shape[1]))

    def pad(a, rows, cols):
        return jnp.pad(a, ((0, rows - a.shape[0]), (0, cols - a.shape[1])))

    w1p = pad(w1, state_dim, fpad).astype(compute_dtype)            # (state_dim, fpad)
    w23p = jnp.concatenate(
        [pad(w2, fpad, fpad), pad(w3, fpad, fpad)], axis=1
    ).astype(compute_dtype)                                         # (fpad, 2*fpad)
    b_all = jnp.stack([
        pad(b1.reshape(1, -1), 1, fpad)[0],
        pad(b2.reshape(1, -1), 1, fpad)[0],
        pad(b3.reshape(1, -1), 1, fpad)[0],
    ]).astype(jnp.float32)                                          # (3, fpad), f32
    return w1p, w23p, b_all


def actor_ppo_forward(state, prepared, *, action_dim, block_batch=512,
                      out_dtype=jnp.float32):
    """tanh(MLP(state)): batch grid, VMEM-resident packed weights, lane-dense out."""
    w1p, w23p, b_all = prepared
    state_dim = w1p.shape[0]
    fpad = w1p.shape[1]

    batch = state.shape[0]
    # Multiple of 16 satisfies the (8,128) sublane rule for f32 AND bf16 inputs
    # (fixes the odd-block_batch correctness concern); single tile when it fits.
    tb = _round_up(min(block_batch, batch), 16)
    b_pad = _round_up(batch, tb)
    num_tiles = b_pad // tb

    x = state
    if b_pad != batch:
        x = jnp.pad(x, ((0, b_pad - batch), (0, 0)))

    # Gate the v7x 2-TC split: only worth it with >=2 tiles of meaningful size.
    semantics = ("parallel",) if (num_tiles >= 2 and tb >= 256) else ("arbitrary",)

    out = pl.pallas_call(
        actor_ppo_kernel,
        out_shape=jax.ShapeDtypeStruct((b_pad, fpad), out_dtype),
        grid=(num_tiles,),
        in_specs=[
            pl.BlockSpec((tb, state_dim), lambda i: (i, 0)),       # state tile
            pl.BlockSpec((state_dim, fpad), lambda i: (0, 0)),     # W1 (resident)
            pl.BlockSpec((fpad, 2 * fpad), lambda i: (0, 0)),      # W2|W3 slab (resident)
            pl.BlockSpec((3, fpad), lambda i: (0, 0)),             # bias slab (resident)
        ],
        out_specs=pl.BlockSpec((tb, fpad), lambda i: (i, 0)),      # lane-dense tile
        compiler_params=pltpu.CompilerParams(dimension_semantics=semantics),
    )(x, w1p, w23p, b_all)
    return out[:batch, :action_dim]


def init_linear(key, fan_in, fan_out):
    """Deterministic init mimicking torch.nn.Linear default (uniform +/- 1/sqrt(fan_in))."""
    kw, kb = jax.random.split(key)
    bound = 1.0 / jnp.sqrt(jnp.float32(fan_in))
    w = jax.random.uniform(kw, (fan_in, fan_out), jnp.float32, -bound, bound)
    b = jax.random.uniform(kb, (1, fan_out), jnp.float32, -bound, bound)
    return w, b


def reference_forward(state, params):
    """Pure-JAX f32 reference for correctness check."""
    (w1, b1), (w2, b2), (w3, b3) = params
    h1 = jnp.maximum(state @ w1 + b1, 0.0)
    h2 = jnp.maximum(h1 @ w2 + b2, 0.0)
    return jnp.tanh(h2 @ w3 + b3)


if __name__ == "__main__":
    # ActorPPO(net_dims=[64, 64], state_dim=32, action_dim=8)
    state_dim, net_dims, action_dim = 32, [64, 64], 8
    batch = 64  # batch=64 with the default block_batch -> a single grid step

    key = jax.random.PRNGKey(0)
    k_state, k1, k2, k3 = jax.random.split(key, 4)

    state = jax.random.normal(k_state, (batch, state_dim), jnp.float32)
    params = [
        init_linear(k1, state_dim, net_dims[0]),
        init_linear(k2, net_dims[0], net_dims[1]),
        init_linear(k3, net_dims[1], action_dim),
    ]
    # TODO(synk): action_std_log / Normal-dist sampling only affect get_action and
    # get_logprob_entropy, not forward(), so they are intentionally not in the kernel.

    ref = reference_forward(state, params)

    # f32 operand path: exact check against the reference.
    prepared_f32 = prepare_params(params, compute_dtype=jnp.float32)
    out_f32 = jax.block_until_ready(
        actor_ppo_forward(state, prepared_f32, action_dim=action_dim))
    assert out_f32.shape == (batch, action_dim)
    assert jnp.allclose(out_f32, ref, atol=1e-5, rtol=1e-5), "f32 mismatch vs reference"

    # bf16 matmul operands (default; native MXU rate), f32 accumulate/elementwise.
    prepared_bf16 = prepare_params(params)  # compute_dtype defaults to bf16
    out_bf16 = jax.block_until_ready(
        actor_ppo_forward(state, prepared_bf16, action_dim=action_dim))
    assert out_bf16.shape == (batch, action_dim)
    assert jnp.allclose(out_bf16, ref, atol=6e-2, rtol=6e-2), "bf16 path drifted too far"

    # Also exercise a multi-tile grid (caller-chosen odd block_batch is clamped
    # to a multiple of 16, so the BlockSpec divisibility rule still holds).
    out_tiled = jax.block_until_ready(
        actor_ppo_forward(state, prepared_f32, action_dim=action_dim, block_batch=24))
    assert jnp.allclose(out_tiled, ref, atol=1e-5, rtol=1e-5), "tiled path mismatch"

    print("KERNEL_OK")
</pallas_src>

<mosaic_0001>
module attributes {stable_mosaic.version = 11 : i64} {
  func.func @actor_ppo_kernel(%arg0: i32, %arg1: memref<64x32xf32, #tpu.memory_space<vmem>>, %arg2: memref<32x128xf32, #tpu.memory_space<vmem>>, %arg3: memref<128x256xf32, #tpu.memory_space<vmem>>, %arg4: memref<3x128xf32, #tpu.memory_space<vmem>>, %arg5: memref<64x128xf32, #tpu.memory_space<vmem>>) attributes {dimension_semantics = [#tpu.dimension_semantics<arbitrary>], iteration_bounds = array<i64: 1>, scalar_prefetch = 0 : i64, scratch_operands = 0 : i64, tpu.core_type = #tpu.core_type<tc>, window_params = [{transform_indices = @transform_0, window_bounds = array<i64: 64, 32>}, {pipeline_mode = #tpu.pipeline_mode<synchronous>, transform_indices = @transform_1, window_bounds = array<i64: 32, 128>}, {pipeline_mode = #tpu.pipeline_mode<synchronous>, transform_indices = @transform_2, window_bounds = array<i64: 128, 256>}, {pipeline_mode = #tpu.pipeline_mode<synchronous>, transform_indices = @transform_3, window_bounds = array<i64: 3, 128>}, {transform_indices = @transform_4, window_bounds = array<i64: 64, 128>}]} {
    %c0 = arith.constant 0 : index
    %c0_0 = arith.constant 0 : index
    %0 = vector.load %arg1[%c0, %c0_0] : memref<64x32xf32, #tpu.memory_space<vmem>>, vector<64x32xf32>
    %c0_1 = arith.constant 0 : index
    %c0_2 = arith.constant 0 : index
    %1 = vector.load %arg2[%c0_1, %c0_2] : memref<32x128xf32, #tpu.memory_space<vmem>>, vector<32x128xf32>
    %cst = arith.constant dense<0.000000e+00> : vector<64x128xf32>
    %2 = tpu.matmul %0, %1, %cst {dimension_numbers = #tpu.dot_dimension_numbers<[1], [0], [0], [1], [0, 0, 1, 1], [], []>} : vector<64x32xf32>, vector<32x128xf32>, vector<64x128xf32> -> vector<64x128xf32>
    %c0_3 = arith.constant 0 : index
    %c0_4 = arith.constant 0 : index
    %3 = vector.load %arg4[%c0_3, %c0_4] : memref<3x128xf32, #tpu.memory_space<vmem>>, vector<1x128xf32>
    %4 = vector.broadcast %3 : vector<1x128xf32> to vector<64x128xf32>
    %5 = arith.addf %2, %4 : vector<64x128xf32>
    %cst_5 = arith.constant 0.000000e+00 : f32
    %6 = vector.broadcast %cst_5 : f32 to vector<64x128xf32>
    %7 = arith.maximumf %5, %6 : vector<64x128xf32>
    %c0_6 = arith.constant 0 : index
    %c0_7 = arith.constant 0 : index
    %8 = vector.load %arg3[%c0_6, %c0_7] : memref<128x256xf32, #tpu.memory_space<vmem>>, vector<128x128xf32>
    %cst_8 = arith.constant dense<0.000000e+00> : vector<64x128xf32>
    %9 = tpu.matmul %7, %8, %cst_8 {dimension_numbers = #tpu.dot_dimension_numbers<[1], [0], [0], [1], [0, 0, 1, 1], [], []>} : vector<64x128xf32>, vector<128x128xf32>, vector<64x128xf32> -> vector<64x128xf32>
    %c1 = arith.constant 1 : index
    %c0_9 = arith.constant 0 : index
    %10 = vector.load %arg4[%c1, %c0_9] : memref<3x128xf32, #tpu.memory_space<vmem>>, vector<1x128xf32>
    %11 = vector.broadcast %10 : vector<1x128xf32> to vector<64x128xf32>
    %12 = arith.addf %9, %11 : vector<64x128xf32>
    %cst_10 = arith.constant 0.000000e+00 : f32
    %13 = vector.broadcast %cst_10 : f32 to vector<64x128xf32>
    %14 = arith.maximumf %12, %13 : vector<64x128xf32>
    %c0_11 = arith.constant 0 : index
    %c128 = arith.constant 128 : index
    %15 = vector.load %arg3[%c0_11, %c128] : memref<128x256xf32, #tpu.memory_space<vmem>>, vector<128x128xf32>
    %cst_12 = arith.constant dense<0.000000e+00> : vector<64x128xf32>
    %16 = tpu.matmul %14, %15, %cst_12 {dimension_numbers = #tpu.dot_dimension_numbers<[1], [0], [0], [1], [0, 0, 1, 1], [], []>} : vector<64x128xf32>, vector<128x128xf32>, vector<64x128xf32> -> vector<64x128xf32>
    %c2 = arith.constant 2 : index
    %c0_13 = arith.constant 0 : index
    %17 = vector.load %arg4[%c2, %c0_13] : memref<3x128xf32, #tpu.memory_space<vmem>>, vector<1x128xf32>
    %18 = vector.broadcast %17 : vector<1x128xf32> to vector<64x128xf32>
    %19 = arith.addf %16, %18 : vector<64x128xf32>
    %20 = math.tanh %19 : vector<64x128xf32>
    %c0_14 = arith.constant 0 : index
    %c0_15 = arith.constant 0 : index
    %21 = vector.load %arg5[%c0_14, %c0_15] : memref<64x128xf32, #tpu.memory_space<vmem>>, vector<64x128xf32>
    tpu.vector_store %arg5[%c0_14, %c0_15], %20 {strides = array<i32>} : memref<64x128xf32, #tpu.memory_space<vmem>>, vector<64x128xf32>,
    return
  }
  func.func @transform_0(%arg0: i32) -> (i32, i32) {
    %c0_i32 = arith.constant 0 : i32
    %c0_i32_0 = arith.constant 0 : i32
    return %arg0, %c0_i32 : i32, i32
  }
  func.func @transform_1(%arg0: i32) -> (i32, i32) {
    %c0_i32 = arith.constant 0 : i32
    %c0_i32_0 = arith.constant 0 : i32
    %c0_i32_1 = arith.constant 0 : i32
    return %c0_i32, %c0_i32_0 : i32, i32
  }
  func.func @transform_2(%arg0: i32) -> (i32, i32) {
    %c0_i32 = arith.constant 0 : i32
    %c0_i32_0 = arith.constant 0 : i32
    %c0_i32_1 = arith.constant 0 : i32
    return %c0_i32, %c0_i32_0 : i32, i32
  }
  func.func @transform_3(%arg0: i32) -> (i32, i32) {
    %c0_i32 = arith.constant 0 : i32
    %c0_i32_0 = arith.constant 0 : i32
    %c0_i32_1 = arith.constant 0 : i32
    return %c0_i32, %c0_i32_0 : i32, i32
  }
  func.func @transform_4(%arg0: i32) -> (i32, i32) {
    %c0_i32 = arith.constant 0 : i32
    %c0_i32_0 = arith.constant 0 : i32
    return %arg0, %c0_i32 : i32, i32
  }
}

</mosaic_0001>

<llo_original>
// kernel: tpu_custom_call.1
$region0: #{tpu_custom_call.1}
  #allocation0 [shape = 'u32[]', space=smem, size = 0x4, offset = 0x4, fixed_abs, tag = 'smem constant byte address 0x4 - core index']
  #allocation1 [shape = 'u32[144,128]{1,0:T(1,128)}', space=vmem, size = 0x12000, scoped, tag = 'internal scratch']
  %s0 = inlined_call_operand.vmem [shape: f32[64,32], index: 0, kind: input, shape index: {}]
  %s1 = inlined_call_operand.vmem [shape: f32[32,128], index: 1, kind: input, shape index: {}]
  %s2 = inlined_call_operand.hbm [shape: f32[128,256], index: 2, kind: input, shape index: {}]
  %s3 = inlined_call_operand.vmem [shape: f32[3,128], index: 3, kind: input, shape index: {}]
  %s4 = inlined_call_operand.hbm [shape: f32[64,128], index: 4, kind: output, shape index: {}]
  %s5 = sld [smem:[#allocation0]]
  $region30: #{tpu_custom_call.1} parent=0
    _
  %s7 = ssub.s32 1, %s5
  %s8 = scalar_select 0, %s7, %s5
  $region1: #{tpu_custom_call.1} parent=0
    #allocation2 [shape = 'u8[131072]{0}', space=vmem, size = 0x20000, scoped, tag = 'input window, operand 2, single buffered']
    #allocation3 [shape = 's32[1]{0}', space=sflag, size = 0x4, scoped, tag = 'scoped memory for tpu_custom_call.1']
    #allocation4 [shape = 's32[1]{0}', space=sflag, size = 0x4, scoped, tag = 'scoped memory for tpu_custom_call.1']
    #allocation5 [shape = 'u8[32768]{0}', space=vmem, size = 0x8000, scoped, tag = 'output window, operand 0, single buffered']
    %9 = vsyncpa [#allocation3], 0
    %10 = vsyncpa [#allocation4], 0
    // Predicated region
    $region2: #{tpu_custom_call.1} parent=1 // pred_check
      _
    $region3: #{tpu_custom_call.1} parent=1 // pred_check_branch
      %12 = sbr.rel (0) target = $region5
    $region4: #{tpu_custom_call.1} parent=1 // pred_region
      _
    $region5: #{tpu_custom_call.1} parent=1 // pred_fallthru
      _
    // Predicated region
    $region6: #{tpu_custom_call.1} parent=1 // pred_check
      _
    $region7: #{tpu_custom_call.1} parent=1 // pred_check_branch
      %14 = sbr.rel (0) target = $region9
    $region8: #{tpu_custom_call.1} parent=1 // pred_region
      _
    $region9: #{tpu_custom_call.1} parent=1 // pred_fallthru
      _
    // Predicated region
    $region10: #{tpu_custom_call.1} parent=1 // pred_check
      _
    $region11: #{tpu_custom_call.1} parent=1 // pred_check_branch
      %16 = sbr.rel (0) target = $region13
    $region12: #{tpu_custom_call.1} parent=1 // pred_region
      %s18 = ssub.s32 4096, 4096
      %19 = vsyncadd [#allocation3], %s18
      %s20 = sshll.u32 [#allocation2], 4
      %s21 = int_to_ptr.vmem [resolvable:$true] %s20
      %26 = dma.hbm_to_vmem [thread:$0]  %s2, 4096, %s21, [#allocation3], 256, 256, 16
    $region13: #{tpu_custom_call.1} parent=1 // pred_fallthru
      _
    // Predicated region
    $region14: #{tpu_custom_call.1} parent=1 // pred_check
      _
    $region15: #{tpu_custom_call.1} parent=1 // pred_check_branch
      %28 = sbr.rel (0) target = $region17
    $region16: #{tpu_custom_call.1} parent=1 // pred_region
      _
    $region17: #{tpu_custom_call.1} parent=1 // pred_fallthru
      _
    // Predicated region
    $region18: #{tpu_custom_call.1} parent=1 // pred_check
      _
    $region19: #{tpu_custom_call.1} parent=1 // pred_check_branch
      %30 = sbr.rel (0) target = $region21
    $region20: #{tpu_custom_call.1} parent=1 // pred_region
      %31 = dma.done [#allocation3], 4096
    $region21: #{tpu_custom_call.1} parent=1 // pred_fallthru
      _
    %v32 = vld [vmem:[%s0] sm:$0xff]
    %v33 = vld [vmem:[%s0 + $0x8] sm:$0xff]
    %v34 = vld [vmem:[%s0 + $0x10] sm:$0xff]
    %v35 = vld [vmem:[%s0 + $0x18] sm:$0xff]
    %v36 = vld [vmem:[%s0 + $0x20] sm:$0xff]
    %v37 = vld [vmem:[%s0 + $0x28] sm:$0xff]
    %v38 = vld [vmem:[%s0 + $0x30] sm:$0xff]
    %v39 = vld [vmem:[%s0 + $0x38] sm:$0xff]
    %v40 = vld [vmem:[%s1] sm:$0xff]
    %v41 = vld [vmem:[%s1 + $0x8] sm:$0xff]
    %v42 = vld [vmem:[%s1 + $0x10] sm:$0xff]
    %v43 = vld [vmem:[%s1 + $0x18] sm:$0xff]
    %v44 = vld [vmem:[%s3] sm:$0x1]
    %v45 = vlaneseq
    %v46 = vshrl.u32 %v45, 7
    %v47 = vsub.s32 0, %v46
    %v48 = vrot.slane %v44, %v47
    %vm49 = vcmask 261120
    %v51 = vsel %vm49, %v32, 0
    %v54 = vsel %vm49, %v33, 0
    %v57 = vsel %vm49, %v34, 0
    %v60 = vsel %vm49, %v35, 0
    %v63 = vsel %vm49, %v36, 0
    %v66 = vsel %vm49, %v37, 0
    %v69 = vsel %vm49, %v38, 0
    %v72 = vsel %vm49, %v39, 0
    %74 = vmatprep.subr.mxu0 0.0
    %75 = vmatpush1.msra.mxu0 %v40
    %76 = vmatprep.subr.mxu0 0.0
    %77 = vmatpush1.msra.mxu0 %v41
    %78 = vmatprep.subr.mxu0 0.0
    %79 = vmatpush1.msra.mxu0 %v42
    %80 = vmatprep.subr.mxu0 0.0
    %81 = vmatpush1.msra.mxu0 %v43
    %82 = vmatprep.subr.mxu0 0.0
    %83 = vmatpush1.msra.mxu0 0.0
    %84 = vmatprep.subr.mxu0 0.0
    %85 = vmatpush1.msra.mxu0 0.0
    %86 = vmatprep.subr.mxu0 0.0
    %87 = vmatpush1.msra.mxu0 0.0
    %88 = vmatprep.subr.mxu0 0.0
    %89 = vmatpush1.msra.mxu0 0.0
    %90 = vmatprep.subr.mxu0 0.0
    %91 = vmatpush1.msra.mxu0 0.0
    %92 = vmatprep.subr.mxu0 0.0
    %93 = vmatpush1.msra.mxu0 0.0
    %94 = vmatprep.subr.mxu0 0.0
    %95 = vmatpush1.msra.mxu0 0.0
    %96 = vmatprep.subr.mxu0 0.0
    %97 = vmatpush1.msra.mxu0 0.0
    %98 = vmatprep.subr.mxu0 0.0
    %99 = vmatpush1.msra.mxu0 0.0
    %100 = vmatprep.subr.mxu0 0.0
    %101 = vmatpush1.msra.mxu0 0.0
    %102 = vmatprep.subr.mxu0 0.0
    %103 = vmatpush1.msra.mxu0 0.0
    %104 = vmatprep.subr.mxu0 0.0
    %105 = vmatpush1.msra.mxu0 0.0
    %106 = vmatprep.subr.mxu0 0.0
    %107 = vmatpush1.msra.mxu0 0.0
    %108 = vmatprep.subr.mxu0 0.0
    %109 = vmatpush1.msra.mxu0 0.0
    %110 = vmatprep.subr.mxu0 0.0
    %111 = vmatpush1.msra.mxu0 0.0
    %112 = vmatprep.subr.mxu0 0.0
    %113 = vmatpush1.msra.mxu0 0.0
    %114 = vmatprep.subr.mxu0 0.0
    %115 = vmatpush1.msra.mxu0 0.0
    %116 = vmatprep.subr.mxu0 0.0
    %117 = vmatpush1.msra.mxu0 0.0
    %118 = vmatprep.subr.mxu0 0.0
    %119 = vmatpush1.msra.mxu0 0.0
    %120 = vmatprep.subr.mxu0 0.0
    %121 = vmatpush1.msra.mxu0 0.0
    %122 = vmatprep.subr.mxu0 0.0
    %123 = vmatpush1.msra.mxu0 0.0
    %124 = vmatprep.subr.mxu0 0.0
    %125 = vmatpush1.msra.mxu0 0.0
    %126 = vmatprep.subr.mxu0 0.0
    %127 = vmatpush1.msra.mxu0 0.0
    %128 = vmatprep.subr.mxu0 0.0
    %129 = vmatpush1.msra.mxu0 0.0
    %130 = vmatprep.subr.mxu0 0.0
    %131 = vmatpush1.msra.mxu0 0.0
    %132 = vmatprep.subr.mxu0 0.0
    %133 = vmatpush1.msra.mxu0 0.0
    %134 = vmatprep.subr.mxu0 0.0
    %135 = vmatpush1.msra.mxu0 0.0
    %136 = vmatprep.subr.mxu0 0.0
    %137 = vmatpush1.msra.mxu0 0.0
    %138 = vmatprep.mubr.f32.mxu0 0.0
    %139 = vmatmul.mubr.f32.gmra.mrb[0].mxu0 %v51
    %v140 = vpop.f32.mrb[0].mxu0
    %v141 = vadd.f32 %v48, %v140
    %v142 = vpop.f32.mrb[0].mxu0
    %143 = vmatprep.mubr.f32.mxu0 0.0
    %144 = vmatmul.mubr.f32.gmra.mrb[0].mxu0 %v54
    %v145 = vpop.f32.mrb[0].mxu0
    %v146 = vadd.f32 %v48, %v145
    %v147 = vpop.f32.mrb[0].mxu0
    %148 = vmatprep.mubr.f32.mxu0 0.0
    %149 = vmatmul.mubr.f32.gmra.mrb[0].mxu0 %v57
    %v150 = vpop.f32.mrb[0].mxu0
    %v151 = vadd.f32 %v48, %v150
    %v152 = vpop.f32.mrb[0].mxu0
    %153 = vmatprep.mubr.f32.mxu0 0.0
    %154 = vmatmul.mubr.f32.gmra.mrb[0].mxu0 %v60
    %v155 = vpop.f32.mrb[0].mxu0
    %v156 = vadd.f32 %v48, %v155
    %v157 = vpop.f32.mrb[0].mxu0
    %158 = vmatprep.mubr.f32.mxu0 0.0
    %159 = vmatmul.mubr.f32.gmra.mrb[0].mxu0 %v63
    %v160 = vpop.f32.mrb[0].mxu0
    %v161 = vadd.f32 %v48, %v160
    %v162 = vpop.f32.mrb[0].mxu0
    %163 = vmatprep.mubr.f32.mxu0 0.0
    %164 = vmatmul.mubr.f32.gmra.mrb[0].mxu0 %v66
    %v165 = vpop.f32.mrb[0].mxu0
    %v166 = vadd.f32 %v48, %v165
    %v167 = vpop.f32.mrb[0].mxu0
    %168 = vmatprep.mubr.f32.mxu0 0.0
    %169 = vmatmul.mubr.f32.gmra.mrb[0].mxu0 %v69
    %v170 = vpop.f32.mrb[0].mxu0
    %v171 = vadd.f32 %v48, %v170
    %v172 = vpop.f32.mrb[0].mxu0
    %173 = vmatprep.mubr.f32.mxu0 0.0
    %174 = vmatmul.mubr.f32.gmra.mrb[0].mxu0 %v72
    %v175 = vpop.f32.mrb[0].mxu0
    %v176 = vadd.f32 %v48, %v175
    %v177 = vpop.f32.mrb[0].mxu0
    %178 = vdwg.mxu0
    %v179 = vmax.f32 %v141, 0.0
    %v180 = vmax.f32 %v146, 0.0
    %v181 = vmax.f32 %v151, 0.0
    %v182 = vmax.f32 %v156, 0.0
    %v183 = vmax.f32 %v161, 0.0
    %v184 = vmax.f32 %v166, 0.0
    %v185 = vmax.f32 %v171, 0.0
    %v186 = vmax.f32 %v176, 0.0
    %v187 = vld [vmem:[#allocation2] sm:$0xff]
    %v188 = vld [vmem:[#allocation2 + $0x10] sm:$0xff]
    %v189 = vld [vmem:[#allocation2 + $0x20] sm:$0xff]
    %v190 = vld [vmem:[#allocation2 + $0x30] sm:$0xff]
    %v191 = vld [vmem:[#allocation2 + $0x40] sm:$0xff]
    %v192 = vld [vmem:[#allocation2 + $0x50] sm:$0xff]
    %v193 = vld [vmem:[#allocation2 + $0x60] sm:$0xff]
    %v194 = vld [vmem:[#allocation2 + $0x70] sm:$0xff]
    %v195 = vld [vmem:[#allocation2 + $0x80] sm:$0xff]
    %v196 = vld [vmem:[#allocation2 + $0x90] sm:$0xff]
    %v197 = vld [vmem:[#allocation2 + $0xa0] sm:$0xff]
    %v198 = vld [vmem:[#allocation2 + $0xb0] sm:$0xff]
    %v199 = vld [vmem:[#allocation2 + $0xc0] sm:$0xff]
    %v200 = vld [vmem:[#allocation2 + $0xd0] sm:$0xff]
    %v201 = vld [vmem:[#allocation2 + $0xe0] sm:$0xff]
    %v202 = vld [vmem:[#allocation2 + $0xf0] sm:$0xff]
    %v203 = vld [vmem:[%s3 + $0x1] sm:$0x1]
    %v204 = vlaneseq
    %v205 = vshrl.u32 %v204, 7
    %v206 = vsub.s32 0, %v205
    %v207 = vrot.slane %v203, %v206
    %208 = vmatprep.subr.mxu0 0.0
    %209 = vmatpush1.msra.mxu0 %v187
    %210 = vmatprep.subr.mxu0 0.0
    %211 = vmatpush1.msra.mxu0 %v188
    %212 = vmatprep.subr.mxu0 0.0
    %213 = vmatpush1.msra.mxu0 %v189
    %214 = vmatprep.subr.mxu0 0.0
    %215 = vmatpush1.msra.mxu0 %v190
    %216 = vmatprep.subr.mxu0 0.0
    %217 = vmatpush1.msra.mxu0 %v191
    %218 = vmatprep.subr.mxu0 0.0
    %219 = vmatpush1.msra.mxu0 %v192
    %220 = vmatprep.subr.mxu0 0.0
    %221 = vmatpush1.msra.mxu0 %v193
    %222 = vmatprep.subr.mxu0 0.0
    %223 = vmatpush1.msra.mxu0 %v194
    %224 = vmatprep.subr.mxu0 0.0
    %225 = vmatpush1.msra.mxu0 %v195
    %226 = vmatprep.subr.mxu0 0.0
    %227 = vmatpush1.msra.mxu0 %v196
    %228 = vmatprep.subr.mxu0 0.0
    %229 = vmatpush1.msra.mxu0 %v197
    %230 = vmatprep.subr.mxu0 0.0
    %231 = vmatpush1.msra.mxu0 %v198
    %232 = vmatprep.subr.mxu0 0.0
    %233 = vmatpush1.msra.mxu0 %v199
    %234 = vmatprep.subr.mxu0 0.0
    %235 = vmatpush1.msra.mxu0 %v200
    %236 = vmatprep.subr.mxu0 0.0
    %237 = vmatpush1.msra.mxu0 %v201
    %238 = vmatprep.subr.mxu0 0.0
    %239 = vmatpush1.msra.mxu0 %v202
    %240 = vmatprep.subr.mxu0 0.0
    %241 = vmatpush1.msra.mxu0 0.0
    %242 = vmatprep.subr.mxu0 0.0
    %243 = vmatpush1.msra.mxu0 0.0
    %244 = vmatprep.subr.mxu0 0.0
    %245 = vmatpush1.msra.mxu0 0.0
    %246 = vmatprep.subr.mxu0 0.0
    %247 = vmatpush1.msra.mxu0 0.0
    %248 = vmatprep.subr.mxu0 0.0
    %249 = vmatpush1.msra.mxu0 0.0
    %250 = vmatprep.subr.mxu0 0.0
    %251 = vmatpush1.msra.mxu0 0.0
    %252 = vmatprep.subr.mxu0 0.0
    %253 = vmatpush1.msra.mxu0 0.0
    %254 = vmatprep.subr.mxu0 0.0
    %255 = vmatpush1.msra.mxu0 0.0
    %256 = vmatprep.subr.mxu0 0.0
    %257 = vmatpush1.msra.mxu0 0.0
    %258 = vmatprep.subr.mxu0 0.0
    %259 = vmatpush1.msra.mxu0 0.0
    %260 = vmatprep.subr.mxu0 0.0
    %261 = vmatpush1.msra.mxu0 0.0
    %262 = vmatprep.subr.mxu0 0.0
    %263 = vmatpush1.msra.mxu0 0.0
    %264 = vmatprep.subr.mxu0 0.0
    %265 = vmatpush1.msra.mxu0 0.0
    %266 = vmatprep.subr.mxu0 0.0
    %267 = vmatpush1.msra.mxu0 0.0
    %268 = vmatprep.subr.mxu0 0.0
    %269 = vmatpush1.msra.mxu0 0.0
    %270 = vmatprep.subr.mxu0 0.0
    %271 = vmatpush1.msra.mxu0 0.0
    %272 = vmatprep.mubr.f32.mxu0 0.0
    %273 = vmatmul.mubr.f32.gmra.mrb[0].mxu0 %v179
    %v274 = vpop.f32.mrb[0].mxu0
    %v275 = vadd.f32 %v207, %v274
    %v276 = vpop.f32.mrb[0].mxu0
    %277 = vmatprep.mubr.f32.mxu0 0.0
    %278 = vmatmul.mubr.f32.gmra.mrb[0].mxu0 %v180
    %v279 = vpop.f32.mrb[0].mxu0
    %v280 = vadd.f32 %v207, %v279
    %v281 = vpop.f32.mrb[0].mxu0
    %282 = vmatprep.mubr.f32.mxu0 0.0
    %283 = vmatmul.mubr.f32.gmra.mrb[0].mxu0 %v181
    %v284 = vpop.f32.mrb[0].mxu0
    %v285 = vadd.f32 %v207, %v284
    %v286 = vpop.f32.mrb[0].mxu0
    %287 = vmatprep.mubr.f32.mxu0 0.0
    %288 = vmatmul.mubr.f32.gmra.mrb[0].mxu0 %v182
    %v289 = vpop.f32.mrb[0].mxu0
    %v290 = vadd.f32 %v207, %v289
    %v291 = vpop.f32.mrb[0].mxu0
    %292 = vmatprep.mubr.f32.mxu0 0.0
    %293 = vmatmul.mubr.f32.gmra.mrb[0].mxu0 %v183
    %v294 = vpop.f32.mrb[0].mxu0
    %v295 = vadd.f32 %v207, %v294
    %v296 = vpop.f32.mrb[0].mxu0
    %297 = vmatprep.mubr.f32.mxu0 0.0
    %298 = vmatmul.mubr.f32.gmra.mrb[0].mxu0 %v184
    %v299 = vpop.f32.mrb[0].mxu0
    %v300 = vadd.f32 %v207, %v299
    %v301 = vpop.f32.mrb[0].mxu0
    %302 = vmatprep.mubr.f32.mxu0 0.0
    %303 = vmatmul.mubr.f32.gmra.mrb[0].mxu0 %v185
    %v304 = vpop.f32.mrb[0].mxu0
    %v305 = vadd.f32 %v207, %v304
    %v306 = vpop.f32.mrb[0].mxu0
    %307 = vmatprep.mubr.f32.mxu0 0.0
    %308 = vmatmul.mubr.f32.gmra.mrb[0].mxu0 %v186
    %v309 = vpop.f32.mrb[0].mxu0
    %v310 = vadd.f32 %v207, %v309
    %v311 = vpop.f32.mrb[0].mxu0
    %312 = vdwg.mxu0
    %v313 = vmax.f32 %v275, 0.0
    %v314 = vmax.f32 %v280, 0.0
    %v315 = vmax.f32 %v285, 0.0
    %v316 = vmax.f32 %v290, 0.0
    %v317 = vmax.f32 %v295, 0.0
    %v318 = vmax.f32 %v300, 0.0
    %v319 = vmax.f32 %v305, 0.0
    %v320 = vmax.f32 %v310, 0.0
    %v321 = vld [vmem:[#allocation2 + $0x8] sm:$0xff]
    %v322 = vld [vmem:[#allocation2 + $0x18] sm:$0xff]
    %v323 = vld [vmem:[#allocation2 + $0x28] sm:$0xff]
    %v324 = vld [vmem:[#allocation2 + $0x38] sm:$0xff]
    %v325 = vld [vmem:[#allocation2 + $0x48] sm:$0xff]
    %v326 = vld [vmem:[#allocation2 + $0x58] sm:$0xff]
    %v327 = vld [vmem:[#allocation2 + $0x68] sm:$0xff]
    %v328 = vld [vmem:[#allocation2 + $0x78] sm:$0xff]
    %v329 = vld [vmem:[#allocation2 + $0x88] sm:$0xff]
    %v330 = vld [vmem:[#allocation2 + $0x98] sm:$0xff]
    %v331 = vld [vmem:[#allocation2 + $0xa8] sm:$0xff]
    %v332 = vld [vmem:[#allocation2 + $0xb8] sm:$0xff]
    %v333 = vld [vmem:[#allocation2 + $0xc8] sm:$0xff]
    %v334 = vld [vmem:[#allocation2 + $0xd8] sm:$0xff]
    %v335 = vld [vmem:[#allocation2 + $0xe8] sm:$0xff]
    %v336 = vld [vmem:[#allocation2 + $0xf8] sm:$0xff]
    %v337 = vld [vmem:[%s3 + $0x2] sm:$0x1]
    %v338 = vlaneseq
    %v339 = vshrl.u32 %v338, 7
    %v340 = vsub.s32 0, %v339
    %v341 = vrot.slane %v337, %v340
    %342 = vmatprep.subr.mxu0 0.0
    %343 = vmatpush1.msra.mxu0 %v321
    %344 = vmatprep.subr.mxu0 0.0
    %345 = vmatpush1.msra.mxu0 %v322
    %346 = vmatprep.subr.mxu0 0.0
    %347 = vmatpush1.msra.mxu0 %v323
    %348 = vmatprep.subr.mxu0 0.0
    %349 = vmatpush1.msra.mxu0 %v324
    %350 = vmatprep.subr.mxu0 0.0
    %351 = vmatpush1.msra.mxu0 %v325
    %352 = vmatprep.subr.mxu0 0.0
    %353 = vmatpush1.msra.mxu0 %v326
    %354 = vmatprep.subr.mxu0 0.0
    %355 = vmatpush1.msra.mxu0 %v327
    %356 = vmatprep.subr.mxu0 0.0
    %357 = vmatpush1.msra.mxu0 %v328
    %358 = vmatprep.subr.mxu0 0.0
    %359 = vmatpush1.msra.mxu0 %v329
    %360 = vmatprep.subr.mxu0 0.0
    %361 = vmatpush1.msra.mxu0 %v330
    %362 = vmatprep.subr.mxu0 0.0
    %363 = vmatpush1.msra.mxu0 %v331
    %364 = vmatprep.subr.mxu0 0.0
    %365 = vmatpush1.msra.mxu0 %v332
    %366 = vmatprep.subr.mxu0 0.0
    %367 = vmatpush1.msra.mxu0 %v333
    %368 = vmatprep.subr.mxu0 0.0
    %369 = vmatpush1.msra.mxu0 %v334
    %370 = vmatprep.subr.mxu0 0.0
    %371 = vmatpush1.msra.mxu0 %v335
    %372 = vmatprep.subr.mxu0 0.0
    %373 = vmatpush1.msra.mxu0 %v336
    %374 = vmatprep.subr.mxu0 0.0
    %375 = vmatpush1.msra.mxu0 0.0
    %376 = vmatprep.subr.mxu0 0.0
    %377 = vmatpush1.msra.mxu0 0.0
    %378 = vmatprep.subr.mxu0 0.0
    %379 = vmatpush1.msra.mxu0 0.0
    %380 = vmatprep.subr.mxu0 0.0
    %381 = vmatpush1.msra.mxu0 0.0
    %382 = vmatprep.subr.mxu0 0.0
    %383 = vmatpush1.msra.mxu0 0.0
    %384 = vmatprep.subr.mxu0 0.0
    %385 = vmatpush1.msra.mxu0 0.0
    %386 = vmatprep.subr.mxu0 0.0
    %387 = vmatpush1.msra.mxu0 0.0
    %388 = vmatprep.subr.mxu0 0.0
    %389 = vmatpush1.msra.mxu0 0.0
    %390 = vmatprep.subr.mxu0 0.0
    %391 = vmatpush1.msra.mxu0 0.0
    %392 = vmatprep.subr.mxu0 0.0
    %393 = vmatpush1.msra.mxu0 0.0
    %394 = vmatprep.subr.mxu0 0.0
    %395 = vmatpush1.msra.mxu0 0.0
    %396 = vmatprep.subr.mxu0 0.0
    %397 = vmatpush1.msra.mxu0 0.0
    %398 = vmatprep.subr.mxu0 0.0
    %399 = vmatpush1.msra.mxu0 0.0
    %400 = vmatprep.subr.mxu0 0.0
    %401 = vmatpush1.msra.mxu0 0.0
    %402 = vmatprep.subr.mxu0 0.0
    %403 = vmatpush1.msra.mxu0 0.0
    %404 = vmatprep.subr.mxu0 0.0
    %405 = vmatpush1.msra.mxu0 0.0
    %406 = vmatprep.mubr.f32.mxu0 0.0
    %407 = vmatmul.mubr.f32.gmra.mrb[0].mxu0 %v313
    %v408 = vpop.f32.mrb[0].mxu0
    %v409 = vadd.f32 %v341, %v408
    %v410 = vpop.f32.mrb[0].mxu0
    %411 = vmatprep.mubr.f32.mxu0 0.0
    %412 = vmatmul.mubr.f32.gmra.mrb[0].mxu0 %v314
    %v413 = vpop.f32.mrb[0].mxu0
    %v414 = vadd.f32 %v341, %v413
    %v415 = vpop.f32.mrb[0].mxu0
    %416 = vmatprep.mubr.f32.mxu0 0.0
    %417 = vmatmul.mubr.f32.gmra.mrb[0].mxu0 %v315
    %v418 = vpop.f32.mrb[0].mxu0
    %v419 = vadd.f32 %v341, %v418
    %v420 = vpop.f32.mrb[0].mxu0
    %421 = vmatprep.mubr.f32.mxu0 0.0
    %422 = vmatmul.mubr.f32.gmra.mrb[0].mxu0 %v316
    %v423 = vpop.f32.mrb[0].mxu0
    %v424 = vadd.f32 %v341, %v423
    %v425 = vpop.f32.mrb[0].mxu0
    %426 = vmatprep.mubr.f32.mxu0 0.0
    %427 = vmatmul.mubr.f32.gmra.mrb[0].mxu0 %v317
    %v428 = vpop.f32.mrb[0].mxu0
    %v429 = vadd.f32 %v341, %v428
    %v430 = vpop.f32.mrb[0].mxu0
    %431 = vmatprep.mubr.f32.mxu0 0.0
    %432 = vmatmul.mubr.f32.gmra.mrb[0].mxu0 %v318
    %v433 = vpop.f32.mrb[0].mxu0
    %v434 = vadd.f32 %v341, %v433
    %v435 = vpop.f32.mrb[0].mxu0
    %436 = vmatprep.mubr.f32.mxu0 0.0
    %437 = vmatmul.mubr.f32.gmra.mrb[0].mxu0 %v319
    %v438 = vpop.f32.mrb[0].mxu0
    %v439 = vadd.f32 %v341, %v438
    %v440 = vpop.f32.mrb[0].mxu0
    %441 = vmatprep.mubr.f32.mxu0 0.0
    %442 = vmatmul.mubr.f32.gmra.mrb[0].mxu0 %v320
    %v443 = vpop.f32.mrb[0].mxu0
    %v444 = vadd.f32 %v341, %v443
    %v445 = vpop.f32.mrb[0].mxu0
    %446 = vdwg.mxu0
    %v447 = vtanh.pop %v409
    %v448 = vtanh.pop %v414
    %v449 = vtanh.pop %v419
    %v450 = vtanh.pop %v424
    %v451 = vtanh.pop %v429
    %v452 = vtanh.pop %v434
    %v453 = vtanh.pop %v439
    %v454 = vtanh.pop %v444
    %455 = vst [vmem:[#allocation5] sm:$0xff] %v447
    %456 = vst [vmem:[#allocation5 + $0x8] sm:$0xff] %v448
    %457 = vst [vmem:[#allocation5 + $0x10] sm:$0xff] %v449
    %458 = vst [vmem:[#allocation5 + $0x18] sm:$0xff] %v450
    %459 = vst [vmem:[#allocation5 + $0x20] sm:$0xff] %v451
    %460 = vst [vmem:[#allocation5 + $0x28] sm:$0xff] %v452
    %461 = vst [vmem:[#allocation5 + $0x30] sm:$0xff] %v453
    %462 = vst [vmem:[#allocation5 + $0x38] sm:$0xff] %v454
    // Predicated region
    $region22: #{tpu_custom_call.1} parent=1 // pred_check
      _
    $region23: #{tpu_custom_call.1} parent=1 // pred_check_branch
      %464 = sbr.rel (0) target = $region25
    $region24: #{tpu_custom_call.1} parent=1 // pred_region
      %s466 = ssub.s32 1024, 1024
      %467 = vsyncadd [#allocation4], %s466
      %s468 = sshll.u32 [#allocation5], 4
      %s469 = int_to_ptr.vmem [resolvable:$true] %s468
      %474 = dma.vmem_to_hbm [thread:$0]  %s469, 1024, %s4, [#allocation4], 128, 128, 8
    $region25: #{tpu_custom_call.1} parent=1 // pred_fallthru
      _
    // Predicated region
    $region26: #{tpu_custom_call.1} parent=1 // pred_check
      _
    $region27: #{tpu_custom_call.1} parent=1 // pred_check_branch
      %476 = sbr.rel (0) target = $region29
    $region28: #{tpu_custom_call.1} parent=1 // pred_region
      %477 = dma.done [#allocation4], 1024
    $region29: #{tpu_custom_call.1} parent=1 // pred_fallthru
      _
    %478 = vsyncpa [#allocation3], 1
    %479 = vsyncpa [#allocation4], 1

</llo_original>
